<compile_context>
chip_gen: v7x
topology: tpu7x:2x2x1
jax: 0.10.0
libtpu: 0.0.40
codegen_flags: <defaults>
</compile_context>

<pallas_src>
import functools
import math

import jax
import jax.numpy as jnp
from jax.experimental import pallas as pl
from jax.experimental.pallas import tpu as pltpu


_LANE = 128
_SUBLANE = 8
_TARGET_TILE_M = 8192        # rows per grid step (review: 4096-8192 sweet spot)
_PALLAS_MIN_ROWS = 256       # below this, plain XLA wins (setup + 1-step pipeline cost)


def _round_up(x, m):
    return (x + m - 1) // m * m


@functools.lru_cache(maxsize=None)
def _vmem_budgets():
    """Generation-aware (vmem_limit_bytes, streamed-tile budget)."""
    try:
        cap = int(pltpu.get_tpu_info().vmem_capacity_bytes)
    except Exception:
        cap = 64 * 1024 * 1024                      # conservative: v7x per-TC VMEM
    vmem_limit = min(3 * cap // 4, 96 * 1024 * 1024)   # 48 MiB on v7x, 96 MiB on v5e/v6e
    stream_budget = min(cap // 2, 48 * 1024 * 1024)    # budget for streamed x/out tiles
    return vmem_limit, stream_budget


def _pick_batch_tile(n, row_bytes, resident_bytes, stream_budget):
    """Largest batch tile (multiple of 8, <= _TARGET_TILE_M) whose double-buffered
    streamed footprint fits the budget; keeps >= 2 grid steps for moderate n so
    both v7x TensorCores get work.  row_bytes must already account for lane
    padding of the last dim in VMEM."""
    if n <= _SUBLANE:
        return n                                   # single full block (exempt from 8-rule)
    avail = max(stream_budget - resident_bytes, 2 * _SUBLANE * row_bytes)
    max_rows = avail // (2 * row_bytes)            # x/out tiles are double-buffered
    tile = min(_TARGET_TILE_M, max_rows, n)
    if n >= 2 * _SUBLANE:
        # v7x megacore: ensure the ("parallel",) grid has >= 2 steps to shard.
        tile = min(tile, _round_up(pl.cdiv(n, 2), _SUBLANE))
    return max(_SUBLANE, (tile // _SUBLANE) * _SUBLANE)


def _resident_spec(block_shape, index_map):
    """Constant-index_map block: DMAed once, so a single VMEM buffer suffices."""
    try:
        return pl.BlockSpec(block_shape, index_map, pipeline_mode=pl.Buffered(1))
    except Exception:  # older jax without pipeline_mode / Buffered(1)
        return pl.BlockSpec(block_shape, index_map)


# ---------------------------------------------------------------------------
# Pallas kernels
# ---------------------------------------------------------------------------
def _dense_linear_kernel(x_ref, w_ref, o_ref):
    # out = x @ W_t, W_t pre-transposed once to (state_dim, action_dim) so the
    # MXU contraction needs no per-step transpose; f32 accumulate.
    o_ref[...] = jnp.dot(
        x_ref[...], w_ref[...], preferred_element_type=jnp.float32
    ).astype(o_ref.dtype)


def _diag_linear_kernel(x_ref, w_ref, o_ref):
    # out = x * w  (broadcast over batch rows) == x @ diag(w)^T
    o_ref[...] = (x_ref[...] * w_ref[...]).astype(o_ref.dtype)


# ---------------------------------------------------------------------------
# Dense (diagonal=False) wrapper
# ---------------------------------------------------------------------------
def prepare_dense_weight(weight):
    """One-time weight prep: transpose torch layout (action_dim, state_dim) to
    (state_dim, action_dim).  No padding -- the output block relies on the
    full-array-dim exemption, so stores stay one contiguous HBM DMA per tile."""
    return jnp.asarray(weight).T


def linear_policy_dense(x, weight_t, *, force_pallas=False):
    """x: (N, state_dim) f32; weight_t: (state_dim, action_dim) from
    prepare_dense_weight.  Returns (N, action_dim)."""
    n, sdim = x.shape
    sdim_w, adim = weight_t.shape
    assert sdim == sdim_w

    if not force_pallas and n < _PALLAS_MIN_ROWS:
        return jnp.dot(x, weight_t)                # small-batch fast path (XLA)

    vmem_limit, stream_budget = _vmem_budgets()
    itemsize = jnp.dtype(x.dtype).itemsize
    # VMEM footprint per batch row: x row + out row, both lane-padded to 128.
    row_bytes = itemsize * (_round_up(sdim, _LANE) + _round_up(adim, _LANE))
    resident = 2 * itemsize * _round_up(sdim, _SUBLANE) * _round_up(adim, _LANE)
    tile_m = _pick_batch_tile(n, row_bytes, resident, stream_budget)
    grid = (pl.cdiv(n, tile_m),)

    cost = pl.CostEstimate(
        flops=2 * n * sdim * adim,
        transcendentals=0,
        bytes_accessed=itemsize * (n * sdim + sdim * adim + n * adim),
    )

    return pl.pallas_call(
        _dense_linear_kernel,
        out_shape=jax.ShapeDtypeStruct((n, adim), x.dtype),
        grid=grid,
        in_specs=[
            pl.BlockSpec((tile_m, sdim), lambda i: (i, 0)),      # batch-tiled x
            _resident_spec((sdim, adim), lambda i: (0, 0)),      # resident weight
        ],
        out_specs=pl.BlockSpec((tile_m, adim), lambda i: (i, 0)),  # unpadded output
        compiler_params=pltpu.CompilerParams(
            dimension_semantics=("parallel",),        # batch axis -> both v7x TCs
            vmem_limit_bytes=vmem_limit,
        ),
        cost_estimate=cost,
    )(x, weight_t)


# ---------------------------------------------------------------------------
# Diagonal (diagonal=True) wrapper
# ---------------------------------------------------------------------------
def _diag_call(x2, w2):
    n, d = x2.shape
    vmem_limit, stream_budget = _vmem_budgets()
    itemsize = jnp.dtype(x2.dtype).itemsize
    row_bytes = itemsize * 2 * _round_up(d, _LANE)            # x row + out row
    resident = 2 * itemsize * _SUBLANE * _round_up(d, _LANE)  # tiny weight row
    tile_m = _pick_batch_tile(n, row_bytes, resident, stream_budget)
    grid = (pl.cdiv(n, tile_m),)

    cost = pl.CostEstimate(
        flops=n * d,
        transcendentals=0,
        bytes_accessed=itemsize * (2 * n * d + d),
    )

    return pl.pallas_call(
        _diag_linear_kernel,
        out_shape=jax.ShapeDtypeStruct((n, d), x2.dtype),
        grid=grid,
        in_specs=[
            pl.BlockSpec((tile_m, d), lambda i: (i, 0)),
            _resident_spec((1, d), lambda i: (0, 0)),
        ],
        out_specs=pl.BlockSpec((tile_m, d), lambda i: (i, 0)),
        compiler_params=pltpu.CompilerParams(
            dimension_semantics=("parallel",),
            vmem_limit_bytes=vmem_limit,
        ),
        cost_estimate=cost,
    )(x2, w2)


def linear_policy_diagonal(x, weight_vec, *, force_pallas=False):
    """x: (N, D) f32, weight_vec: (D,) f32  (DiagonalLinear, bias=False)."""
    n, d = x.shape
    if not force_pallas and n < _PALLAS_MIN_ROWS:
        return x * weight_vec[None, :]             # XLA fused elementwise is at roofline
    if d % _LANE != 0 and _LANE % d == 0 and n % (_LANE // d) == 0:
        # Lane-dense packing: fold (128 // D) batch rows into one 128-wide lane
        # row (free row-major reshape) and tile w to match -> unmasked stores.
        pack = _LANE // d
        x_packed = x.reshape(n // pack, _LANE)
        w_packed = jnp.tile(weight_vec, pack).reshape(1, _LANE)
        return _diag_call(x_packed, w_packed).reshape(n, d)
    return _diag_call(x, weight_vec.reshape(1, d))


# ---------------------------------------------------------------------------
# Deterministic parameter init (mirrors the torch module)
# ---------------------------------------------------------------------------
def init_dense_weight(key, state_dim, action_dim, dtype=jnp.float32):
    # torch.nn.Linear default init: U(-1/sqrt(fan_in), 1/sqrt(fan_in))
    bound = 1.0 / math.sqrt(state_dim)
    return jax.random.uniform(
        key, (action_dim, state_dim), dtype=dtype, minval=-bound, maxval=bound
    )


def init_diag_weight(key, dim, dtype=jnp.float32):
    # DiagonalLinear.reset_parameters: U(-1, 1)
    return jax.random.uniform(key, (dim,), dtype=dtype, minval=-1.0, maxval=1.0)


# ---------------------------------------------------------------------------
if __name__ == "__main__":
    key = jax.random.PRNGKey(0)
    k_x, k_w, k_x2, k_xd, k_wd = jax.random.split(key, 5)

    # --- Dense (diagonal=False): state_dim=32, action_dim=16 ---
    STATE_DIM, ACTION_DIM = 32, 16
    w = init_dense_weight(k_w, STATE_DIM, ACTION_DIM)     # torch layout (adim, sdim)
    w_t = prepare_dense_weight(w)                         # one-time prep, not per call

    # small batch, forced through the Pallas kernel
    x_small = jax.random.normal(k_x, (8, STATE_DIM), dtype=jnp.float32)
    out_small = jax.block_until_ready(
        linear_policy_dense(x_small, w_t, force_pallas=True))
    assert out_small.shape == (8, ACTION_DIM)
    assert jnp.allclose(out_small, x_small @ w.T, atol=1e-5, rtol=1e-5)

    # moderate batch: exercises the >=2-step grid (megacore sharding on v7x)
    x_med = jax.random.normal(k_x2, (512, STATE_DIM), dtype=jnp.float32)
    out_med = jax.block_until_ready(
        linear_policy_dense(x_med, w_t, force_pallas=True))
    assert out_med.shape == (512, ACTION_DIM)
    assert jnp.allclose(out_med, x_med @ w.T, atol=1e-5, rtol=1e-5)

    # default dispatch (small-batch XLA fast path) stays correct
    out_fast = jax.block_until_ready(linear_policy_dense(x_small, w_t))
    assert jnp.allclose(out_fast, x_small @ w.T, atol=1e-5, rtol=1e-5)

    # --- Diagonal (diagonal=True): state_dim == action_dim = 32, batch=8 ---
    N, D = 8, 32
    xd = jax.random.normal(k_xd, (N, D), dtype=jnp.float32)
    wd = init_diag_weight(k_wd, D)
    out_diag = jax.block_until_ready(
        linear_policy_diagonal(xd, wd, force_pallas=True))
    assert out_diag.shape == (N, D)
    assert jnp.allclose(out_diag, xd * wd[None, :], atol=1e-5, rtol=1e-5)

    print("KERNEL_OK")
</pallas_src>

<mosaic_0001>
module attributes {stable_mosaic.version = 11 : i64} {
  func.func @_dense_linear_kernel(%arg0: i32, %arg1: memref<8x32xf32, #tpu.memory_space<vmem>>, %arg2: memref<32x16xf32, #tpu.memory_space<vmem>>, %arg3: memref<8x16xf32, #tpu.memory_space<vmem>>) attributes {dimension_semantics = [#tpu.dimension_semantics<parallel>], iteration_bounds = array<i64: 1>, scalar_prefetch = 0 : i64, scratch_operands = 0 : i64, tpu.core_type = #tpu.core_type<tc>, window_params = [{transform_indices = @transform_0, window_bounds = array<i64: 8, 32>}, {pipeline_mode = #tpu.pipeline_mode<synchronous>, transform_indices = @transform_1, window_bounds = array<i64: 32, 16>}, {transform_indices = @transform_2, window_bounds = array<i64: 8, 16>}]} {
    %c0 = arith.constant 0 : index
    %c0_0 = arith.constant 0 : index
    %0 = vector.load %arg1[%c0, %c0_0] : memref<8x32xf32, #tpu.memory_space<vmem>>, vector<8x32xf32>
    %c0_1 = arith.constant 0 : index
    %c0_2 = arith.constant 0 : index
    %1 = vector.load %arg2[%c0_1, %c0_2] : memref<32x16xf32, #tpu.memory_space<vmem>>, vector<32x16xf32>
    %cst = arith.constant dense<0.000000e+00> : vector<8x16xf32>
    %2 = tpu.matmul %0, %1, %cst {dimension_numbers = #tpu.dot_dimension_numbers<[1], [0], [0], [1], [0, 0, 1, 1], [], []>} : vector<8x32xf32>, vector<32x16xf32>, vector<8x16xf32> -> vector<8x16xf32>
    %c0_3 = arith.constant 0 : index
    %c0_4 = arith.constant 0 : index
    %3 = vector.load %arg3[%c0_3, %c0_4] : memref<8x16xf32, #tpu.memory_space<vmem>>, vector<8x16xf32>
    tpu.vector_store %arg3[%c0_3, %c0_4], %2 {strides = array<i32>} : memref<8x16xf32, #tpu.memory_space<vmem>>, vector<8x16xf32>,
    return
  }
  func.func @transform_0(%arg0: i32) -> (i32, i32) {
    %c0_i32 = arith.constant 0 : i32
    %c0_i32_0 = arith.constant 0 : i32
    return %arg0, %c0_i32 : i32, i32
  }
  func.func @transform_1(%arg0: i32) -> (i32, i32) {
    %c0_i32 = arith.constant 0 : i32
    %c0_i32_0 = arith.constant 0 : i32
    %c0_i32_1 = arith.constant 0 : i32
    return %c0_i32, %c0_i32_0 : i32, i32
  }
  func.func @transform_2(%arg0: i32) -> (i32, i32) {
    %c0_i32 = arith.constant 0 : i32
    %c0_i32_0 = arith.constant 0 : i32
    return %arg0, %c0_i32 : i32, i32
  }
}

</mosaic_0001>

<llo_original>
// kernel: tpu_custom_call.1
$region0: #{tpu_custom_call.1}
  #allocation0 [shape = 'u32[]', space=smem, size = 0x4, offset = 0x4, fixed_abs, tag = 'smem constant byte address 0x4 - core index']
  #allocation1 [shape = 'u32[144,128]{1,0:T(1,128)}', space=vmem, size = 0x12000, scoped, tag = 'internal scratch']
  %s0 = inlined_call_operand.vmem [shape: f32[8,32], index: 0, kind: input, shape index: {}]
  %s1 = inlined_call_operand.vmem [shape: f32[32,16], index: 1, kind: input, shape index: {}]
  %s2 = inlined_call_operand.hbm [shape: f32[8,16], index: 2, kind: output, shape index: {}]
  %s3 = sld [smem:[#allocation0]]
  $region18: #{tpu_custom_call.1} parent=0
    _
  %s5 = ssub.s32 1, %s3
  %s6 = scalar_select 0, %s5, %s3
  $region1: #{tpu_custom_call.1} parent=0
    #allocation2 [shape = 'u8[4096]{0}', space=vmem, size = 0x1000, scoped, tag = 'output window, operand 0, single buffered']
    #allocation3 [shape = 's32[1]{0}', space=sflag, size = 0x4, scoped, tag = 'scoped memory for tpu_custom_call.1']
    %7 = vsyncpa [#allocation3], 0
    // Predicated region
    $region2: #{tpu_custom_call.1} parent=1 // pred_check
      _
    $region3: #{tpu_custom_call.1} parent=1 // pred_check_branch
      %9 = sbr.rel (0) target = $region5
    $region4: #{tpu_custom_call.1} parent=1 // pred_region
      _
    $region5: #{tpu_custom_call.1} parent=1 // pred_fallthru
      _
    // Predicated region
    $region6: #{tpu_custom_call.1} parent=1 // pred_check
      _
    $region7: #{tpu_custom_call.1} parent=1 // pred_check_branch
      %11 = sbr.rel (0) target = $region9
    $region8: #{tpu_custom_call.1} parent=1 // pred_region
      _
    $region9: #{tpu_custom_call.1} parent=1 // pred_fallthru
      _
    %v12 = vld [vmem:[%s0] sm:$0xff]
    %v13 = vld [vmem:[%s1] sm:$0xff]
    %v14 = vld [vmem:[%s1 + $0x8] sm:$0xff]
    %v15 = vld [vmem:[%s1 + $0x10] sm:$0xff]
    %v16 = vld [vmem:[%s1 + $0x18] sm:$0xff]
    %vm17 = vcmask 261120
    %v19 = vsel %vm17, %v12, 0
    %21 = vmatprep.subr.mxu0 0.0
    %22 = vmatpush1.msra.mxu0 %v13
    %23 = vmatprep.subr.mxu0 0.0
    %24 = vmatpush1.msra.mxu0 %v14
    %25 = vmatprep.subr.mxu0 0.0
    %26 = vmatpush1.msra.mxu0 %v15
    %27 = vmatprep.subr.mxu0 0.0
    %28 = vmatpush1.msra.mxu0 %v16
    %29 = vmatprep.subr.mxu0 0.0
    %30 = vmatpush1.msra.mxu0 0.0
    %31 = vmatprep.subr.mxu0 0.0
    %32 = vmatpush1.msra.mxu0 0.0
    %33 = vmatprep.subr.mxu0 0.0
    %34 = vmatpush1.msra.mxu0 0.0
    %35 = vmatprep.subr.mxu0 0.0
    %36 = vmatpush1.msra.mxu0 0.0
    %37 = vmatprep.subr.mxu0 0.0
    %38 = vmatpush1.msra.mxu0 0.0
    %39 = vmatprep.subr.mxu0 0.0
    %40 = vmatpush1.msra.mxu0 0.0
    %41 = vmatprep.subr.mxu0 0.0
    %42 = vmatpush1.msra.mxu0 0.0
    %43 = vmatprep.subr.mxu0 0.0
    %44 = vmatpush1.msra.mxu0 0.0
    %45 = vmatprep.subr.mxu0 0.0
    %46 = vmatpush1.msra.mxu0 0.0
    %47 = vmatprep.subr.mxu0 0.0
    %48 = vmatpush1.msra.mxu0 0.0
    %49 = vmatprep.subr.mxu0 0.0
    %50 = vmatpush1.msra.mxu0 0.0
    %51 = vmatprep.subr.mxu0 0.0
    %52 = vmatpush1.msra.mxu0 0.0
    %53 = vmatprep.subr.mxu0 0.0
    %54 = vmatpush1.msra.mxu0 0.0
    %55 = vmatprep.subr.mxu0 0.0
    %56 = vmatpush1.msra.mxu0 0.0
    %57 = vmatprep.subr.mxu0 0.0
    %58 = vmatpush1.msra.mxu0 0.0
    %59 = vmatprep.subr.mxu0 0.0
    %60 = vmatpush1.msra.mxu0 0.0
    %61 = vmatprep.subr.mxu0 0.0
    %62 = vmatpush1.msra.mxu0 0.0
    %63 = vmatprep.subr.mxu0 0.0
    %64 = vmatpush1.msra.mxu0 0.0
    %65 = vmatprep.subr.mxu0 0.0
    %66 = vmatpush1.msra.mxu0 0.0
    %67 = vmatprep.subr.mxu0 0.0
    %68 = vmatpush1.msra.mxu0 0.0
    %69 = vmatprep.subr.mxu0 0.0
    %70 = vmatpush1.msra.mxu0 0.0
    %71 = vmatprep.subr.mxu0 0.0
    %72 = vmatpush1.msra.mxu0 0.0
    %73 = vmatprep.subr.mxu0 0.0
    %74 = vmatpush1.msra.mxu0 0.0
    %75 = vmatprep.subr.mxu0 0.0
    %76 = vmatpush1.msra.mxu0 0.0
    %77 = vmatprep.subr.mxu0 0.0
    %78 = vmatpush1.msra.mxu0 0.0
    %79 = vmatprep.subr.mxu0 0.0
    %80 = vmatpush1.msra.mxu0 0.0
    %81 = vmatprep.subr.mxu0 0.0
    %82 = vmatpush1.msra.mxu0 0.0
    %83 = vmatprep.subr.mxu0 0.0
    %84 = vmatpush1.msra.mxu0 0.0
    %85 = vmatprep.mubr.f32.mxu0 0.0
    %86 = vmatmul.mubr.f32.gmra.mrb[0].mxu0 %v19
    %v87 = vpop.f32.mrb[0].mxu0
    %v88 = vadd.f32 0.0, %v87
    %v89 = vpop.f32.mrb[0].mxu0
    %90 = vdwg.mxu0
    %vm91 = vcmask 130048
    %92 = vst.msk [vmem:[#allocation2] sm:$0xff] %vm91, %v88
    // Predicated region
    $region10: #{tpu_custom_call.1} parent=1 // pred_check
      _
    $region11: #{tpu_custom_call.1} parent=1 // pred_check_branch
      %94 = sbr.rel (0) target = $region13
    $region12: #{tpu_custom_call.1} parent=1 // pred_region
      %s96 = ssub.s32 128, 128
      %97 = vsyncadd [#allocation3], %s96
      %s99 = sshll.u32 [#allocation2], 4
      %s100 = int_to_ptr.vmem [resolvable:$true] %s99
      %102 = dma.vmem_to_hbm [thread:$0]  %s100, 128, %s2, [#allocation3]
    $region13: #{tpu_custom_call.1} parent=1 // pred_fallthru
      _
    // Predicated region
    $region14: #{tpu_custom_call.1} parent=1 // pred_check
      _
    $region15: #{tpu_custom_call.1} parent=1 // pred_check_branch
      %104 = sbr.rel (0) target = $region17
    $region16: #{tpu_custom_call.1} parent=1 // pred_region
      %105 = dma.done [#allocation3], 128
    $region17: #{tpu_custom_call.1} parent=1 // pred_fallthru
      _
    %106 = vsyncpa [#allocation3], 1

</llo_original>
